<compile_context>
chip_gen: v5e
topology: v5e:2x2
jax: 0.10.0
libtpu: 0.0.40
codegen_flags: <defaults>
</compile_context>

<pallas_src>
import functools

import jax
import jax.numpy as jnp
import numpy as np
from jax.experimental import pallas as pl
from jax.experimental.pallas import tpu as pltpu


def _round_up(x: int, m: int) -> int:
    return ((x + m - 1) // m) * m


# ----------------------------- Pallas kernel ------------------------------ #
def ent_emb_mlp_kernel(xT_ref, w1_ref, b1_ref, w2_ref, b2_ref, w3_ref, b3_ref,
                       o_ref):
    """3-layer MLP in batch-on-lanes orientation.

    xT_ref : (Dp, T)    features x batch-tile (batch on the lane axis)
    w1_ref : (H1p, Dp)  torch-layout (out, in) weights, zero-padded to x8
    b1_ref : (H1p, 1)   column bias, broadcast across lanes
    w2_ref : (H2p, H1p) / b2_ref : (H2p, 1)
    w3_ref : (H2p, 1)   final weight column; b3_ref : (1,) scalar in SMEM
    o_ref  : (1, T)     lane-dense per-row sigmoid output
    """
    xT = xT_ref[...]
    # inner layer 1: Linear + relu   (act_func='relu', the module default)
    h = jnp.dot(w1_ref[...], xT,
                preferred_element_type=jnp.float32,
                precision=jax.lax.Precision.HIGHEST) + b1_ref[...]
    h = jnp.maximum(h, 0.0)
    # inner layer 2: Linear + relu
    h = jnp.dot(w2_ref[...], h,
                preferred_element_type=jnp.float32,
                precision=jax.lax.Precision.HIGHEST) + b2_ref[...]
    h = jnp.maximum(h, 0.0)
    # output layer: width-1 Linear done as VPU multiply + sublane reduction
    # (avoids an N=1 MXU matmul and keeps the store lane-dense), then sigmoid.
    z = jnp.sum(h * w3_ref[...], axis=0, keepdims=True) + b3_ref[0]   # (1, T)
    o_ref[...] = jax.nn.sigmoid(z)
    # TODO(synk): 'selu' branch of activ_func not implemented (default 'relu' is).


# ------------------------------ wrapper ------------------------------------ #
@functools.partial(jax.jit, static_argnames=("n_cat", "max_batch_tile"))
def ent_emb_forward(x, emb_tables, weights, biases, *, n_cat, max_batch_tile=2048):
    """Reproduces EntEmbNNRegression.forward for act_func='relu'."""
    w1, w2, w3 = weights            # stored (in, out)
    b1, b2, b3 = biases             # stored (1, out)
    # TODO(synk): kernel specialized to exactly two hidden layers
    # (layers=[h1, h2]); the module allows an arbitrary `layers` list.
    D, H1 = w1.shape
    H2 = w2.shape[1]

    B = x.shape[0]
    n_num = x.shape[1] - n_cat

    # Pad feature / hidden (contraction / sublane) dims only to the f32
    # sublane granularity (8).  All weight / bias blocks are full-extent, so
    # sub-128 lane widths are legal; only the batch tile (lane axis of feats^T
    # and the output) must be a multiple of 128.
    Dp, H1p, H2p = (_round_up(d, 8) for d in (D, H1, H2))

    # Batch lives on the lane axis.  Large tiles amortize per-grid-step
    # overhead; for B > 128 pick the tile so the grid has >= 2 "parallel"
    # steps (keeps both v7x TensorCores busy).  The 2048 cap keeps the
    # double-buffered tile + intermediates well inside the scoped-VMEM default.
    if B > 128:
        target = _round_up((B + 1) // 2, 128)
    else:
        target = 128
    batch_tile = min(max_batch_tile, target)
    B_pad = _round_up(B, batch_tile)

    # ---- glue: format_X_emb, written straight into the padded transposed
    # operand (one update per part, no separate concat -> transpose -> pad). --
    featsT = jnp.zeros((Dp, B_pad), jnp.float32)
    row = 0
    for i, tbl in enumerate(emb_tables):
        codes = x[:, i].astype(jnp.int32)                        # codes stored as float
        emb_t = jnp.take(tbl.astype(jnp.float32).T, codes, axis=1)   # (emb_dim, B)
        featsT = featsT.at[row:row + tbl.shape[1], :B].set(emb_t)
        row += tbl.shape[1]
    if n_num > 0:
        featsT = featsT.at[row:row + n_num, :B].set(
            x[:, n_cat:].astype(jnp.float32).T)
        row += n_num
    assert row == D, (row, D)

    # Transposed + zero-padded weights / biases.  Pad rows & cols must stay
    # exactly zero so relu(0)=0 and the w3 reduction ignores padded rows.
    w1t = jnp.zeros((H1p, Dp), jnp.float32).at[:H1, :D].set(w1.T)
    b1c = jnp.zeros((H1p, 1), jnp.float32).at[:H1, 0].set(b1[0])
    w2t = jnp.zeros((H2p, H1p), jnp.float32).at[:H2, :H1].set(w2.T)
    b2c = jnp.zeros((H2p, 1), jnp.float32).at[:H2, 0].set(b2[0])
    w3c = jnp.zeros((H2p, 1), jnp.float32).at[:H2, :].set(w3)
    b3s = b3.reshape(1).astype(jnp.float32)          # true scalar -> SMEM

    grid = (B_pad // batch_tile,)
    out = pl.pallas_call(
        ent_emb_mlp_kernel,
        out_shape=jax.ShapeDtypeStruct((1, B_pad), jnp.float32),
        grid=grid,
        in_specs=[
            pl.BlockSpec((Dp, batch_tile), lambda i: (0, i)),   # feats^T (batch-tiled)
            pl.BlockSpec((H1p, Dp), lambda i: (0, 0)),          # w1 (resident)
            pl.BlockSpec((H1p, 1), lambda i: (0, 0)),           # b1
            pl.BlockSpec((H2p, H1p), lambda i: (0, 0)),         # w2
            pl.BlockSpec((H2p, 1), lambda i: (0, 0)),           # b2
            pl.BlockSpec((H2p, 1), lambda i: (0, 0)),           # w3 column
            pl.BlockSpec(memory_space=pltpu.MemorySpace.SMEM),  # b3 scalar
        ],
        out_specs=pl.BlockSpec((1, batch_tile), lambda i: (0, i)),
        compiler_params=pltpu.CompilerParams(
            dimension_semantics=("parallel",)),
        cost_estimate=pl.CostEstimate(
            flops=2 * B_pad * (Dp * H1p + H1p * H2p + H2p),
            transcendentals=B_pad,
            bytes_accessed=4 * (Dp * B_pad + H1p * (Dp + 1)
                                + H2p * (H1p + 2) + 1 + B_pad)),
    )(featsT, w1t, b1c, w2t, b2c, w3c, b3s)

    # lane-dense (1, B_pad) -> module's (B, 1)
    return out[0, :B].reshape(B, 1)


# ----------------------- deterministic parameter init ---------------------- #
def init_params(key, cat_vocab_sizes, n_num, layers):
    emb_dims = [min(50, (v + 1) // 2) for v in cat_vocab_sizes]   # module rule
    in_size = sum(emb_dims) + n_num
    net_arq = [in_size] + list(layers) + [1]

    n_keys = len(cat_vocab_sizes) + 2 * (len(net_arq) - 1)
    keys = list(jax.random.split(key, n_keys))

    # embeddings: torch.nn.init.uniform_(-0.05, 0.05)
    emb_tables = []
    for v, d in zip(cat_vocab_sizes, emb_dims):
        k = keys.pop(0)
        emb_tables.append(jax.random.uniform(k, (v, d), jnp.float32, -0.05, 0.05))

    # linears: PyTorch nn.Linear default init, uniform(-1/sqrt(fan_in), +...)
    weights, biases = [], []
    for li in range(len(net_arq) - 1):
        fan_in, fan_out = net_arq[li], net_arq[li + 1]
        bound = 1.0 / np.sqrt(fan_in)
        kw = keys.pop(0)
        kb = keys.pop(0)
        w = jax.random.uniform(kw, (fan_in, fan_out), jnp.float32, -bound, bound)
        b = jax.random.uniform(kb, (1, fan_out), jnp.float32, -bound, bound)
        weights.append(w)
        biases.append(b)
    return emb_tables, weights, biases, in_size


# ------------------------------ reference ---------------------------------- #
def reference_forward(x, emb_tables, weights, biases, n_cat):
    parts = []
    for i, tbl in enumerate(emb_tables):
        parts.append(jnp.take(tbl, x[:, i].astype(jnp.int32), axis=0))
    parts.append(x[:, n_cat:])
    h = jnp.concatenate(parts, axis=1).astype(jnp.float32)
    n_layers = len(weights)
    for li in range(n_layers):
        h = jnp.dot(h, weights[li],
                    precision=jax.lax.Precision.HIGHEST) + biases[li]
        if li < n_layers - 1:
            h = jnp.maximum(h, 0.0)
        else:
            h = jax.nn.sigmoid(h)
    return h


# -------------------------------- main -------------------------------------- #
if __name__ == "__main__":
    key = jax.random.PRNGKey(0)

    # small synthetic configuration consistent with the module
    cat_vocab_sizes = [10, 7, 5]        # 3 categorical features
    n_cat = len(cat_vocab_sizes)
    n_num = 4                           # 4 continuous features
    layers = [32, 16]                   # hidden layer architecture
    batch = 16

    k_param, k_cat, k_num = jax.random.split(key, 3)
    emb_tables, weights, biases, in_size = init_params(
        k_param, cat_vocab_sizes, n_num, layers)

    # input x: (batch, n_cat + n_num), categorical codes first (as floats),
    # then continuous features — exactly what format_X / the dataloader emit.
    cat_cols = []
    for ci, v in enumerate(cat_vocab_sizes):
        kc = jax.random.fold_in(k_cat, ci)
        cat_cols.append(
            jax.random.randint(kc, (batch, 1), 0, v).astype(jnp.float32))
    num_cols = jax.random.normal(k_num, (batch, n_num), jnp.float32)
    x = jnp.concatenate(cat_cols + [num_cols], axis=1)   # (16, 7) float32

    out = ent_emb_forward(x, emb_tables, weights, biases, n_cat=n_cat)
    out = jax.block_until_ready(out)

    ref = reference_forward(x, emb_tables, weights, biases, n_cat)
    np.testing.assert_allclose(np.asarray(out), np.asarray(ref),
                               rtol=1e-5, atol=1e-5)
    assert out.shape == (batch, 1) and out.dtype == jnp.float32

    print("KERNEL_OK")
</pallas_src>

<mosaic_0001>
module attributes {stable_mosaic.version = 11 : i64} {
  func.func @ent_emb_mlp_kernel(%arg0: i32, %arg1: memref<16x128xf32, #tpu.memory_space<vmem>>, %arg2: memref<32x16xf32, #tpu.memory_space<vmem>>, %arg3: memref<32x1xf32, #tpu.memory_space<vmem>>, %arg4: memref<16x32xf32, #tpu.memory_space<vmem>>, %arg5: memref<16x1xf32, #tpu.memory_space<vmem>>, %arg6: memref<16x1xf32, #tpu.memory_space<vmem>>, %arg7: memref<1xf32, #tpu.memory_space<smem>>, %arg8: memref<1x128xf32, #tpu.memory_space<vmem>>) attributes {dimension_semantics = [#tpu.dimension_semantics<parallel>], iteration_bounds = array<i64: 1>, scalar_prefetch = 0 : i64, scratch_operands = 0 : i64, tpu.core_type = #tpu.core_type<tc>, window_params = [{transform_indices = @transform_0, window_bounds = array<i64: 16, 128>}, {pipeline_mode = #tpu.pipeline_mode<synchronous>, transform_indices = @transform_1, window_bounds = array<i64: 32, 16>}, {pipeline_mode = #tpu.pipeline_mode<synchronous>, transform_indices = @transform_2, window_bounds = array<i64: 32, 1>}, {pipeline_mode = #tpu.pipeline_mode<synchronous>, transform_indices = @transform_3, window_bounds = array<i64: 16, 32>}, {pipeline_mode = #tpu.pipeline_mode<synchronous>, transform_indices = @transform_4, window_bounds = array<i64: 16, 1>}, {pipeline_mode = #tpu.pipeline_mode<synchronous>, transform_indices = @transform_5, window_bounds = array<i64: 16, 1>}, {transform_indices = @transform_6, window_bounds = array<i64: 1>}, {transform_indices = @transform_7, window_bounds = array<i64: 1, 128>}]} {
    %c0 = arith.constant 0 : index
    %c0_0 = arith.constant 0 : index
    %0 = vector.load %arg1[%c0, %c0_0] : memref<16x128xf32, #tpu.memory_space<vmem>>, vector<16x128xf32>
    %c0_1 = arith.constant 0 : index
    %c0_2 = arith.constant 0 : index
    %1 = vector.load %arg2[%c0_1, %c0_2] : memref<32x16xf32, #tpu.memory_space<vmem>>, vector<32x16xf32>
    %cst = arith.constant dense<0.000000e+00> : vector<32x128xf32>
    %2 = tpu.matmul %1, %0, %cst {dimension_numbers = #tpu.dot_dimension_numbers<[1], [0], [0], [1], [0, 0, 1, 1], [], []>, precision = #tpu.contract_precision<fp32>} : vector<32x16xf32>, vector<16x128xf32>, vector<32x128xf32> -> vector<32x128xf32>
    %c0_3 = arith.constant 0 : index
    %c0_4 = arith.constant 0 : index
    %3 = vector.load %arg3[%c0_3, %c0_4] : memref<32x1xf32, #tpu.memory_space<vmem>>, vector<32x1xf32>
    %4 = vector.broadcast %3 : vector<32x1xf32> to vector<32x128xf32>
    %5 = arith.addf %2, %4 : vector<32x128xf32>
    %cst_5 = arith.constant 0.000000e+00 : f32
    %6 = vector.broadcast %cst_5 : f32 to vector<32x128xf32>
    %7 = arith.maximumf %5, %6 : vector<32x128xf32>
    %c0_6 = arith.constant 0 : index
    %c0_7 = arith.constant 0 : index
    %8 = vector.load %arg4[%c0_6, %c0_7] : memref<16x32xf32, #tpu.memory_space<vmem>>, vector<16x32xf32>
    %cst_8 = arith.constant dense<0.000000e+00> : vector<16x128xf32>
    %9 = tpu.matmul %8, %7, %cst_8 {dimension_numbers = #tpu.dot_dimension_numbers<[1], [0], [0], [1], [0, 0, 1, 1], [], []>, precision = #tpu.contract_precision<fp32>} : vector<16x32xf32>, vector<32x128xf32>, vector<16x128xf32> -> vector<16x128xf32>
    %c0_9 = arith.constant 0 : index
    %c0_10 = arith.constant 0 : index
    %10 = vector.load %arg5[%c0_9, %c0_10] : memref<16x1xf32, #tpu.memory_space<vmem>>, vector<16x1xf32>
    %11 = vector.broadcast %10 : vector<16x1xf32> to vector<16x128xf32>
    %12 = arith.addf %9, %11 : vector<16x128xf32>
    %cst_11 = arith.constant 0.000000e+00 : f32
    %13 = vector.broadcast %cst_11 : f32 to vector<16x128xf32>
    %14 = arith.maximumf %12, %13 : vector<16x128xf32>
    %c0_12 = arith.constant 0 : index
    %c0_13 = arith.constant 0 : index
    %15 = vector.load %arg6[%c0_12, %c0_13] : memref<16x1xf32, #tpu.memory_space<vmem>>, vector<16x1xf32>
    %16 = vector.broadcast %15 : vector<16x1xf32> to vector<16x128xf32>
    %17 = arith.mulf %14, %16 : vector<16x128xf32>
    %cst_14 = arith.constant dense<0.000000e+00> : vector<128xf32>
    %18 = vector.multi_reduction <add>, %17, %cst_14 [0] : vector<16x128xf32> to vector<128xf32>
    %19 = vector.shape_cast %18 : vector<128xf32> to vector<1x128xf32>
    %c0_15 = arith.constant 0 : index
    %20 = memref.load %arg7[%c0_15] : memref<1xf32, #tpu.memory_space<smem>>
    %21 = vector.broadcast %20 : f32 to vector<1x128xf32>
    %22 = arith.addf %19, %21 : vector<1x128xf32>
    %23 = arith.negf %22 : vector<1x128xf32>
    %24 = math.exp %23 : vector<1x128xf32>
    %cst_16 = arith.constant 1.000000e+00 : f32
    %25 = vector.broadcast %cst_16 : f32 to vector<1x128xf32>
    %26 = arith.addf %25, %24 : vector<1x128xf32>
    %27 = arith.divf %25, %26 : vector<1x128xf32>
    %c0_17 = arith.constant 0 : index
    %c0_18 = arith.constant 0 : index
    %28 = vector.load %arg8[%c0_17, %c0_18] : memref<1x128xf32, #tpu.memory_space<vmem>>, vector<1x128xf32>
    tpu.vector_store %arg8[%c0_17, %c0_18], %27 {strides = array<i32>} : memref<1x128xf32, #tpu.memory_space<vmem>>, vector<1x128xf32>,
    return
  }
  func.func @transform_0(%arg0: i32) -> (i32, i32) {
    %c0_i32 = arith.constant 0 : i32
    %c0_i32_0 = arith.constant 0 : i32
    return %c0_i32, %arg0 : i32, i32
  }
  func.func @transform_1(%arg0: i32) -> (i32, i32) {
    %c0_i32 = arith.constant 0 : i32
    %c0_i32_0 = arith.constant 0 : i32
    %c0_i32_1 = arith.constant 0 : i32
    return %c0_i32, %c0_i32_0 : i32, i32
  }
  func.func @transform_2(%arg0: i32) -> (i32, i32) {
    %c0_i32 = arith.constant 0 : i32
    %c0_i32_0 = arith.constant 0 : i32
    %c0_i32_1 = arith.constant 0 : i32
    return %c0_i32, %c0_i32_0 : i32, i32
  }
  func.func @transform_3(%arg0: i32) -> (i32, i32) {
    %c0_i32 = arith.constant 0 : i32
    %c0_i32_0 = arith.constant 0 : i32
    %c0_i32_1 = arith.constant 0 : i32
    return %c0_i32, %c0_i32_0 : i32, i32
  }
  func.func @transform_4(%arg0: i32) -> (i32, i32) {
    %c0_i32 = arith.constant 0 : i32
    %c0_i32_0 = arith.constant 0 : i32
    %c0_i32_1 = arith.constant 0 : i32
    return %c0_i32, %c0_i32_0 : i32, i32
  }
  func.func @transform_5(%arg0: i32) -> (i32, i32) {
    %c0_i32 = arith.constant 0 : i32
    %c0_i32_0 = arith.constant 0 : i32
    %c0_i32_1 = arith.constant 0 : i32
    return %c0_i32, %c0_i32_0 : i32, i32
  }
  func.func @transform_6(%arg0: i32) -> i32 {
    %c0_i32 = arith.constant 0 : i32
    %c0_i32_0 = arith.constant 0 : i32
    return %c0_i32 : i32
  }
  func.func @transform_7(%arg0: i32) -> (i32, i32) {
    %c0_i32 = arith.constant 0 : i32
    %c0_i32_0 = arith.constant 0 : i32
    return %c0_i32, %arg0 : i32, i32
  }
}

</mosaic_0001>

<llo_original>
// kernel: ent_emb_forward.1
$region0: #{ent_emb_forward.1}
  #allocation0 [shape = 'u32[]', space=smem, size = 0x4, offset = 0x4, fixed_abs, tag = 'smem constant byte address 0x4 - core index']
  #allocation1 [shape = 'u32[72,128]{1,0:T(1,128)}', space=vmem, size = 0x9000, scoped, tag = 'internal scratch']
  #allocation2 [shape = 'f32[1]{0:T(128)S(6)}', space=smem, size = 0x200, scoped, tag = 'scoped memory for ent_emb_forward.1']
  %s0 = inlined_call_operand.vmem [shape: f32[16,128], index: 0, kind: input, shape index: {}]
  %s1 = inlined_call_operand.vmem [shape: f32[32,16], index: 1, kind: input, shape index: {}]
  %s2 = inlined_call_operand.vmem [shape: f32[32,1], index: 2, kind: input, shape index: {}]
  %s3 = inlined_call_operand.vmem [shape: f32[16,32], index: 3, kind: input, shape index: {}]
  %s4 = inlined_call_operand.vmem [shape: f32[16,1], index: 4, kind: input, shape index: {}]
  %s5 = inlined_call_operand.vmem [shape: f32[16,1], index: 5, kind: input, shape index: {}]
  %s6 = inlined_call_operand.<no memory space> [shape: f32[1], index: 6, kind: input, shape index: {}]
  %s7 = inlined_call_operand.vmem [shape: f32[1,128], index: 7, kind: output, shape index: {}]
  %s8 = sld [smem:[#allocation0]]
  $region38: #{ent_emb_forward.1} parent=0
    _
  %s10 = ssub.s32 1, %s8
  %s11 = scalar_select 0, %s10, %s8
  %12 = sst [smem:[#allocation2]] %s6
  // Predicated region
  $region2: #{ent_emb_forward.1} parent=0 // pred_check
    _
  $region3: #{ent_emb_forward.1} parent=0 // pred_check_branch
    %14 = sbr.rel (0) target = $region5
  $region4: #{ent_emb_forward.1} parent=0 // pred_region
    _
  $region5: #{ent_emb_forward.1} parent=0 // pred_fallthru
    _
  // Predicated region
  $region6: #{ent_emb_forward.1} parent=0 // pred_check
    _
  $region7: #{ent_emb_forward.1} parent=0 // pred_check_branch
    %16 = sbr.rel (0) target = $region9
  $region8: #{ent_emb_forward.1} parent=0 // pred_region
    _
  $region9: #{ent_emb_forward.1} parent=0 // pred_fallthru
    _
  // Predicated region
  $region10: #{ent_emb_forward.1} parent=0 // pred_check
    _
  $region11: #{ent_emb_forward.1} parent=0 // pred_check_branch
    %18 = sbr.rel (0) target = $region13
  $region12: #{ent_emb_forward.1} parent=0 // pred_region
    _
  $region13: #{ent_emb_forward.1} parent=0 // pred_fallthru
    _
  // Predicated region
  $region14: #{ent_emb_forward.1} parent=0 // pred_check
    _
  $region15: #{ent_emb_forward.1} parent=0 // pred_check_branch
    %20 = sbr.rel (0) target = $region17
  $region16: #{ent_emb_forward.1} parent=0 // pred_region
    _
  $region17: #{ent_emb_forward.1} parent=0 // pred_fallthru
    _
  // Predicated region
  $region18: #{ent_emb_forward.1} parent=0 // pred_check
    _
  $region19: #{ent_emb_forward.1} parent=0 // pred_check_branch
    %22 = sbr.rel (0) target = $region21
  $region20: #{ent_emb_forward.1} parent=0 // pred_region
    _
  $region21: #{ent_emb_forward.1} parent=0 // pred_fallthru
    _
  // Predicated region
  $region22: #{ent_emb_forward.1} parent=0 // pred_check
    _
  $region23: #{ent_emb_forward.1} parent=0 // pred_check_branch
    %24 = sbr.rel (0) target = $region25
  $region24: #{ent_emb_forward.1} parent=0 // pred_region
    _
  $region25: #{ent_emb_forward.1} parent=0 // pred_fallthru
    _
  // Predicated region
  $region26: #{ent_emb_forward.1} parent=0 // pred_check
    _
  $region27: #{ent_emb_forward.1} parent=0 // pred_check_branch
    %26 = sbr.rel (0) target = $region29
  $region28: #{ent_emb_forward.1} parent=0 // pred_region
    _
  $region29: #{ent_emb_forward.1} parent=0 // pred_fallthru
    _
  %v27 = vld [vmem:[%s0] sm:$0xff]
  %v28 = vld [vmem:[%s0 + $0x8] sm:$0xff]
  %v29 = vld [vmem:[%s1] sm:$0xff]
  %v30 = vld [vmem:[%s1 + $0x8] sm:$0xff]
  %v31 = vld [vmem:[%s1 + $0x10] sm:$0xff]
  %v32 = vld [vmem:[%s1 + $0x18] sm:$0xff]
  %v33 = vld [vmem:[%s2] sm:$0xff]
  %v34 = vld [vmem:[%s2 + $0x8] sm:$0xff]
  %v35 = vld [vmem:[%s2 + $0x10] sm:$0xff]
  %v36 = vld [vmem:[%s2 + $0x18] sm:$0xff]
  %38 = vset.pattern.permute.xlu0 0
  %39 = vperm.xlu0 %38, %v33
  %v40 = vpop.permute.xlu0 %39
  %43 = vset.pattern.permute.xlu0 0
  %44 = vperm.xlu0 %43, %v34
  %v45 = vpop.permute.xlu0 %44
  %48 = vset.pattern.permute.xlu0 0
  %49 = vperm.xlu0 %48, %v35
  %v50 = vpop.permute.xlu0 %49
  %53 = vset.pattern.permute.xlu0 0
  %54 = vperm.xlu0 %53, %v36
  %v55 = vpop.permute.xlu0 %54
  %vm57 = vcmask 130048
  %v59 = vsel %vm57, %v29, 0
  %v62 = vsel %vm57, %v30, 0
  %v65 = vsel %vm57, %v31, 0
  %v68 = vsel %vm57, %v32, 0
  %70 = vmatpush.msra.mxu0 0.0
  %71 = vmatpush.msra.mxu0 0.0
  %72 = vmatpush.msra.mxu0 0.0
  %73 = vmatpush.msra.mxu0 0.0
  %74 = vmatpush.msra.mxu0 0.0
  %75 = vmatpush.msra.mxu0 0.0
  %76 = vmatpush.msra.mxu0 0.0
  %77 = vmatpush.msra.mxu0 0.0
  %78 = vmatpush.msra.mxu0 0.0
  %79 = vmatpush.msra.mxu0 0.0
  %80 = vmatpush.msra.mxu0 0.0
  %81 = vmatpush.msra.mxu0 0.0
  %82 = vmatpush.msra.mxu0 0.0
  %83 = vmatpush.msra.mxu0 0.0
  %v84 = vand.u32 %v28, 4294901760
  %85 = vmatpush.msra.mxu0 %v84
  %v86 = vand.u32 %v27, 4294901760
  %87 = vmatpush.msra.mxu0 %v86
  %v88 = vand.u32 %v59, 4294901760
  %v89 = vsub.f32 %v59, %v88
  %v90 = vand.u32 %v89, 4294901760
  %v91 = vsub.f32 %v89, %v90
  %v92 = vand.u32 %v91, 4294901760
  %93 = vmatmul.f32.gmra.mxu0 %v92
  %v94 = vpop.f32.mrf.mxu0
  %v95 = vadd.f32 %v40, %v94
  %v96 = vand.u32 %v62, 4294901760
  %v97 = vsub.f32 %v62, %v96
  %v98 = vand.u32 %v97, 4294901760
  %v99 = vsub.f32 %v97, %v98
  %v100 = vand.u32 %v99, 4294901760
  %101 = vmatmul.f32.gmra.mxu0 %v100
  %v102 = vpop.f32.mrf.mxu0
  %v103 = vadd.f32 %v45, %v102
  %v104 = vand.u32 %v65, 4294901760
  %v105 = vsub.f32 %v65, %v104
  %v106 = vand.u32 %v105, 4294901760
  %v107 = vsub.f32 %v105, %v106
  %v108 = vand.u32 %v107, 4294901760
  %109 = vmatmul.f32.gmra.mxu0 %v108
  %v110 = vpop.f32.mrf.mxu0
  %v111 = vadd.f32 %v50, %v110
  %v112 = vand.u32 %v68, 4294901760
  %v113 = vsub.f32 %v68, %v112
  %v114 = vand.u32 %v113, 4294901760
  %v115 = vsub.f32 %v113, %v114
  %v116 = vand.u32 %v115, 4294901760
  %117 = vmatmul.f32.gmra.mxu0 %v116
  %v118 = vpop.f32.mrf.mxu0
  %v119 = vadd.f32 %v55, %v118
  %120 = vdwg.mxu0
  %121 = vmatpush.msra.mxu0 0.0
  %122 = vmatpush.msra.mxu0 0.0
  %123 = vmatpush.msra.mxu0 0.0
  %124 = vmatpush.msra.mxu0 0.0
  %125 = vmatpush.msra.mxu0 0.0
  %126 = vmatpush.msra.mxu0 0.0
  %127 = vmatpush.msra.mxu0 0.0
  %128 = vmatpush.msra.mxu0 0.0
  %129 = vmatpush.msra.mxu0 0.0
  %130 = vmatpush.msra.mxu0 0.0
  %131 = vmatpush.msra.mxu0 0.0
  %132 = vmatpush.msra.mxu0 0.0
  %133 = vmatpush.msra.mxu0 0.0
  %134 = vmatpush.msra.mxu0 0.0
  %v135 = vand.u32 %v28, 4294901760
  %v136 = vsub.f32 %v28, %v135
  %v137 = vand.u32 %v136, 4294901760
  %v138 = vsub.f32 %v136, %v137
  %v139 = vand.u32 %v138, 4294901760
  %140 = vmatpush.msra.mxu0 %v139
  %v141 = vand.u32 %v27, 4294901760
  %v142 = vsub.f32 %v27, %v141
  %v143 = vand.u32 %v142, 4294901760
  %v144 = vsub.f32 %v142, %v143
  %v145 = vand.u32 %v144, 4294901760
  %146 = vmatpush.msra.mxu0 %v145
  %v147 = vand.u32 %v59, 4294901760
  %148 = vmatmul.f32.gmra.mxu0 %v147
  %v149 = vpop.f32.mrf.mxu0
  %v150 = vadd.f32 %v95, %v149
  %v151 = vand.u32 %v62, 4294901760
  %152 = vmatmul.f32.gmra.mxu0 %v151
  %v153 = vpop.f32.mrf.mxu0
  %v154 = vadd.f32 %v103, %v153
  %v155 = vand.u32 %v65, 4294901760
  %156 = vmatmul.f32.gmra.mxu0 %v155
  %v157 = vpop.f32.mrf.mxu0
  %v158 = vadd.f32 %v111, %v157
  %v159 = vand.u32 %v68, 4294901760
  %160 = vmatmul.f32.gmra.mxu0 %v159
  %v161 = vpop.f32.mrf.mxu0
  %v162 = vadd.f32 %v119, %v161
  %163 = vdwg.mxu0
  %164 = vmatpush.msra.mxu0 0.0
  %165 = vmatpush.msra.mxu0 0.0
  %166 = vmatpush.msra.mxu0 0.0
  %167 = vmatpush.msra.mxu0 0.0
  %168 = vmatpush.msra.mxu0 0.0
  %169 = vmatpush.msra.mxu0 0.0
  %170 = vmatpush.msra.mxu0 0.0
  %171 = vmatpush.msra.mxu0 0.0
  %172 = vmatpush.msra.mxu0 0.0
  %173 = vmatpush.msra.mxu0 0.0
  %174 = vmatpush.msra.mxu0 0.0
  %175 = vmatpush.msra.mxu0 0.0
  %176 = vmatpush.msra.mxu0 0.0
  %177 = vmatpush.msra.mxu0 0.0
  %v178 = vand.u32 %v28, 4294901760
  %v179 = vsub.f32 %v28, %v178
  %180 = vmatpush.msra.mxu0 %v179
  %v181 = vand.u32 %v27, 4294901760
  %v182 = vsub.f32 %v27, %v181
  %183 = vmatpush.msra.mxu0 %v182
  %v184 = vand.u32 %v59, 4294901760
  %v185 = vsub.f32 %v59, %v184
  %186 = vmatmul.f32.gmra.mxu0 %v185
  %v187 = vpop.f32.mrf.mxu0
  %v188 = vadd.f32 %v150, %v187
  %v189 = vand.u32 %v62, 4294901760
  %v190 = vsub.f32 %v62, %v189
  %191 = vmatmul.f32.gmra.mxu0 %v190
  %v192 = vpop.f32.mrf.mxu0
  %v193 = vadd.f32 %v154, %v192
  %v194 = vand.u32 %v65, 4294901760
  %v195 = vsub.f32 %v65, %v194
  %196 = vmatmul.f32.gmra.mxu0 %v195
  %v197 = vpop.f32.mrf.mxu0
  %v198 = vadd.f32 %v158, %v197
  %v199 = vand.u32 %v68, 4294901760
  %v200 = vsub.f32 %v68, %v199
  %201 = vmatmul.f32.gmra.mxu0 %v200
  %v202 = vpop.f32.mrf.mxu0
  %v203 = vadd.f32 %v162, %v202
  %204 = vdwg.mxu0
  %205 = vmatpush.msra.mxu0 0.0
  %206 = vmatpush.msra.mxu0 0.0
  %207 = vmatpush.msra.mxu0 0.0
  %208 = vmatpush.msra.mxu0 0.0
  %209 = vmatpush.msra.mxu0 0.0
  %210 = vmatpush.msra.mxu0 0.0
  %211 = vmatpush.msra.mxu0 0.0
  %212 = vmatpush.msra.mxu0 0.0
  %213 = vmatpush.msra.mxu0 0.0
  %214 = vmatpush.msra.mxu0 0.0
  %215 = vmatpush.msra.mxu0 0.0
  %216 = vmatpush.msra.mxu0 0.0
  %217 = vmatpush.msra.mxu0 0.0
  %218 = vmatpush.msra.mxu0 0.0
  %v219 = vand.u32 %v28, 4294901760
  %220 = vmatpush.msra.mxu0 %v219
  %v221 = vand.u32 %v27, 4294901760
  %222 = vmatpush.msra.mxu0 %v221
  %v223 = vand.u32 %v59, 4294901760
  %v224 = vsub.f32 %v59, %v223
  %v225 = vand.u32 %v224, 4294901760
  %226 = vmatmul.f32.gmra.mxu0 %v225
  %v227 = vpop.f32.mrf.mxu0
  %v228 = vadd.f32 %v188, %v227
  %v229 = vand.u32 %v62, 4294901760
  %v230 = vsub.f32 %v62, %v229
  %v231 = vand.u32 %v230, 4294901760
  %232 = vmatmul.f32.gmra.mxu0 %v231
  %v233 = vpop.f32.mrf.mxu0
  %v234 = vadd.f32 %v193, %v233
  %v235 = vand.u32 %v65, 4294901760
  %v236 = vsub.f32 %v65, %v235
  %v237 = vand.u32 %v236, 4294901760
  %238 = vmatmul.f32.gmra.mxu0 %v237
  %v239 = vpop.f32.mrf.mxu0
  %v240 = vadd.f32 %v198, %v239
  %v241 = vand.u32 %v68, 4294901760
  %v242 = vsub.f32 %v68, %v241
  %v243 = vand.u32 %v242, 4294901760
  %244 = vmatmul.f32.gmra.mxu0 %v243
  %v245 = vpop.f32.mrf.mxu0
  %v246 = vadd.f32 %v203, %v245
  %247 = vdwg.mxu0
  %248 = vmatpush.msra.mxu0 0.0
  %249 = vmatpush.msra.mxu0 0.0
  %250 = vmatpush.msra.mxu0 0.0
  %251 = vmatpush.msra.mxu0 0.0
  %252 = vmatpush.msra.mxu0 0.0
  %253 = vmatpush.msra.mxu0 0.0
  %254 = vmatpush.msra.mxu0 0.0
  %255 = vmatpush.msra.mxu0 0.0
  %256 = vmatpush.msra.mxu0 0.0
  %257 = vmatpush.msra.mxu0 0.0
  %258 = vmatpush.msra.mxu0 0.0
  %259 = vmatpush.msra.mxu0 0.0
  %260 = vmatpush.msra.mxu0 0.0
  %261 = vmatpush.msra.mxu0 0.0
  %v262 = vand.u32 %v28, 4294901760
  %v263 = vsub.f32 %v28, %v262
  %v264 = vand.u32 %v263, 4294901760
  %265 = vmatpush.msra.mxu0 %v264
  %v266 = vand.u32 %v27, 4294901760
  %v267 = vsub.f32 %v27, %v266
  %v268 = vand.u32 %v267, 4294901760
  %269 = vmatpush.msra.mxu0 %v268
  %v270 = vand.u32 %v59, 4294901760
  %271 = vmatmul.f32.gmra.mxu0 %v270
  %v272 = vpop.f32.mrf.mxu0
  %v273 = vadd.f32 %v228, %v272
  %v274 = vand.u32 %v62, 4294901760
  %275 = vmatmul.f32.gmra.mxu0 %v274
  %v276 = vpop.f32.mrf.mxu0
  %v277 = vadd.f32 %v234, %v276
  %v278 = vand.u32 %v65, 4294901760
  %279 = vmatmul.f32.gmra.mxu0 %v278
  %v280 = vpop.f32.mrf.mxu0
  %v281 = vadd.f32 %v240, %v280
  %v282 = vand.u32 %v68, 4294901760
  %283 = vmatmul.f32.gmra.mxu0 %v282
  %v284 = vpop.f32.mrf.mxu0
  %v285 = vadd.f32 %v246, %v284
  %286 = vdwg.mxu0
  %287 = vmatpush.msra.mxu0 0.0
  %288 = vmatpush.msra.mxu0 0.0
  %289 = vmatpush.msra.mxu0 0.0
  %290 = vmatpush.msra.mxu0 0.0
  %291 = vmatpush.msra.mxu0 0.0
  %292 = vmatpush.msra.mxu0 0.0
  %293 = vmatpush.msra.mxu0 0.0
  %294 = vmatpush.msra.mxu0 0.0
  %295 = vmatpush.msra.mxu0 0.0
  %296 = vmatpush.msra.mxu0 0.0
  %297 = vmatpush.msra.mxu0 0.0
  %298 = vmatpush.msra.mxu0 0.0
  %299 = vmatpush.msra.mxu0 0.0
  %300 = vmatpush.msra.mxu0 0.0
  %v301 = vand.u32 %v28, 4294901760
  %302 = vmatpush.msra.mxu0 %v301
  %v303 = vand.u32 %v27, 4294901760
  %304 = vmatpush.msra.mxu0 %v303
  %v305 = vand.u32 %v59, 4294901760
  %306 = vmatmul.f32.gmra.mxu0 %v305
  %v307 = vpop.f32.mrf.mxu0
  %v308 = vadd.f32 %v273, %v307
  %v309 = vand.u32 %v62, 4294901760
  %310 = vmatmul.f32.gmra.mxu0 %v309
  %v311 = vpop.f32.mrf.mxu0
  %v312 = vadd.f32 %v277, %v311
  %v313 = vand.u32 %v65, 4294901760
  %314 = vmatmul.f32.gmra.mxu0 %v313
  %v315 = vpop.f32.mrf.mxu0
  %v316 = vadd.f32 %v281, %v315
  %v317 = vand.u32 %v68, 4294901760
  %318 = vmatmul.f32.gmra.mxu0 %v317
  %v319 = vpop.f32.mrf.mxu0
  %v320 = vadd.f32 %v285, %v319
  %321 = vdwg.mxu0
  %v322 = vmax.f32 %v308, 0.0
  %v323 = vmax.f32 %v312, 0.0
  %v324 = vmax.f32 %v316, 0.0
  %v325 = vmax.f32 %v320, 0.0
  %v326 = vld [vmem:[%s3] sm:$0xff]
  %v327 = vld [vmem:[%s3 + $0x8] sm:$0xff]
  %v328 = vld [vmem:[%s4] sm:$0xff]
  %v329 = vld [vmem:[%s4 + $0x8] sm:$0xff]
  %331 = vset.pattern.permute.xlu0 0
  %332 = vperm.xlu0 %331, %v328
  %v333 = vpop.permute.xlu0 %332
  %336 = vset.pattern.permute.xlu0 0
  %337 = vperm.xlu0 %336, %v329
  %v338 = vpop.permute.xlu0 %337
  %vm340 = vcmask 261120
  %v342 = vsel %vm340, %v326, 0
  %v345 = vsel %vm340, %v327, 0
  %347 = vmatpush.msra.mxu0 0.0
  %348 = vmatpush.msra.mxu0 0.0
  %349 = vmatpush.msra.mxu0 0.0
  %350 = vmatpush.msra.mxu0 0.0
  %351 = vmatpush.msra.mxu0 0.0
  %352 = vmatpush.msra.mxu0 0.0
  %353 = vmatpush.msra.mxu0 0.0
  %354 = vmatpush.msra.mxu0 0.0
  %355 = vmatpush.msra.mxu0 0.0
  %356 = vmatpush.msra.mxu0 0.0
  %357 = vmatpush.msra.mxu0 0.0
  %358 = vmatpush.msra.mxu0 0.0
  %v359 = vand.u32 %v325, 4294901760
  %360 = vmatpush.msra.mxu0 %v359
  %v361 = vand.u32 %v324, 4294901760
  %362 = vmatpush.msra.mxu0 %v361
  %v363 = vand.u32 %v323, 4294901760
  %364 = vmatpush.msra.mxu0 %v363
  %v365 = vand.u32 %v322, 4294901760
  %366 = vmatpush.msra.mxu0 %v365
  %v367 = vand.u32 %v342, 4294901760
  %v368 = vsub.f32 %v342, %v367
  %v369 = vand.u32 %v368, 4294901760
  %v370 = vsub.f32 %v368, %v369
  %v371 = vand.u32 %v370, 4294901760
  %372 = vmatmul.f32.gmra.mxu0 %v371
  %v373 = vpop.f32.mrf.mxu0
  %v374 = vadd.f32 %v333, %v373
  %v375 = vand.u32 %v345, 4294901760
  %v376 = vsub.f32 %v345, %v375
  %v377 = vand.u32 %v376, 4294901760
  %v378 = vsub.f32 %v376, %v377
  %v379 = vand.u32 %v378, 4294901760
  %380 = vmatmul.f32.gmra.mxu0 %v379
  %v381 = vpop.f32.mrf.mxu0
  %v382 = vadd.f32 %v338, %v381
  %383 = vdwg.mxu0
  %384 = vmatpush.msra.mxu0 0.0
  %385 = vmatpush.msra.mxu0 0.0
  %386 = vmatpush.msra.mxu0 0.0
  %387 = vmatpush.msra.mxu0 0.0
  %388 = vmatpush.msra.mxu0 0.0
  %389 = vmatpush.msra.mxu0 0.0
  %390 = vmatpush.msra.mxu0 0.0
  %391 = vmatpush.msra.mxu0 0.0
  %392 = vmatpush.msra.mxu0 0.0
  %393 = vmatpush.msra.mxu0 0.0
  %394 = vmatpush.msra.mxu0 0.0
  %395 = vmatpush.msra.mxu0 0.0
  %v396 = vand.u32 %v325, 4294901760
  %v397 = vsub.f32 %v325, %v396
  %v398 = vand.u32 %v397, 4294901760
  %v399 = vsub.f32 %v397, %v398
  %v400 = vand.u32 %v399, 4294901760
  %401 = vmatpush.msra.mxu0 %v400
  %v402 = vand.u32 %v324, 4294901760
  %v403 = vsub.f32 %v324, %v402
  %v404 = vand.u32 %v403, 4294901760
  %v405 = vsub.f32 %v403, %v404
  %v406 = vand.u32 %v405, 4294901760
  %407 = vmatpush.msra.mxu0 %v406
  %v408 = vand.u32 %v323, 4294901760
  %v409 = vsub.f32 %v323, %v408
  %v410 = vand.u32 %v409, 4294901760
  %v411 = vsub.f32 %v409, %v410
  %v412 = vand.u32 %v411, 4294901760
  %413 = vmatpush.msra.mxu0 %v412
  %v414 = vand.u32 %v322, 4294901760
  %v415 = vsub.f32 %v322, %v414
  %v416 = vand.u32 %v415, 4294901760
  %v417 = vsub.f32 %v415, %v416
  %v418 = vand.u32 %v417, 4294901760
  %419 = vmatpush.msra.mxu0 %v418
  %v420 = vand.u32 %v342, 4294901760
  %421 = vmatmul.f32.gmra.mxu0 %v420
  %v422 = vpop.f32.mrf.mxu0
  %v423 = vadd.f32 %v374, %v422
  %v424 = vand.u32 %v345, 4294901760
  %425 = vmatmul.f32.gmra.mxu0 %v424
  %v426 = vpop.f32.mrf.mxu0
  %v427 = vadd.f32 %v382, %v426
  %428 = vdwg.mxu0
  %429 = vmatpush.msra.mxu0 0.0
  %430 = vmatpush.msra.mxu0 0.0
  %431 = vmatpush.msra.mxu0 0.0
  %432 = vmatpush.msra.mxu0 0.0
  %433 = vmatpush.msra.mxu0 0.0
  %434 = vmatpush.msra.mxu0 0.0
  %435 = vmatpush.msra.mxu0 0.0
  %436 = vmatpush.msra.mxu0 0.0
  %437 = vmatpush.msra.mxu0 0.0
  %438 = vmatpush.msra.mxu0 0.0
  %439 = vmatpush.msra.mxu0 0.0
  %440 = vmatpush.msra.mxu0 0.0
  %v441 = vand.u32 %v325, 4294901760
  %v442 = vsub.f32 %v325, %v441
  %443 = vmatpush.msra.mxu0 %v442
  %v444 = vand.u32 %v324, 4294901760
  %v445 = vsub.f32 %v324, %v444
  %446 = vmatpush.msra.mxu0 %v445
  %v447 = vand.u32 %v323, 4294901760
  %v448 = vsub.f32 %v323, %v447
  %449 = vmatpush.msra.mxu0 %v448
  %v450 = vand.u32 %v322, 4294901760
  %v451 = vsub.f32 %v322, %v450
  %452 = vmatpush.msra.mxu0 %v451
  %v453 = vand.u32 %v342, 4294901760
  %v454 = vsub.f32 %v342, %v453
  %455 = vmatmul.f32.gmra.mxu0 %v454
  %v456 = vpop.f32.mrf.mxu0
  %v457 = vadd.f32 %v423, %v456
  %v458 = vand.u32 %v345, 4294901760
  %v459 = vsub.f32 %v345, %v458
  %460 = vmatmul.f32.gmra.mxu0 %v459
  %v461 = vpop.f32.mrf.mxu0
  %v462 = vadd.f32 %v427, %v461
  %463 = vdwg.mxu0
  %464 = vmatpush.msra.mxu0 0.0
  %465 = vmatpush.msra.mxu0 0.0
  %466 = vmatpush.msra.mxu0 0.0
  %467 = vmatpush.msra.mxu0 0.0
  %468 = vmatpush.msra.mxu0 0.0
  %469 = vmatpush.msra.mxu0 0.0
  %470 = vmatpush.msra.mxu0 0.0
  %471 = vmatpush.msra.mxu0 0.0
  %472 = vmatpush.msra.mxu0 0.0
  %473 = vmatpush.msra.mxu0 0.0
  %474 = vmatpush.msra.mxu0 0.0
  %475 = vmatpush.msra.mxu0 0.0
  %v476 = vand.u32 %v325, 4294901760
  %477 = vmatpush.msra.mxu0 %v476
  %v478 = vand.u32 %v324, 4294901760
  %479 = vmatpush.msra.mxu0 %v478
  %v480 = vand.u32 %v323, 4294901760
  %481 = vmatpush.msra.mxu0 %v480
  %v482 = vand.u32 %v322, 4294901760
  %483 = vmatpush.msra.mxu0 %v482
  %v484 = vand.u32 %v342, 4294901760
  %v485 = vsub.f32 %v342, %v484
  %v486 = vand.u32 %v485, 4294901760
  %487 = vmatmul.f32.gmra.mxu0 %v486
  %v488 = vpop.f32.mrf.mxu0
  %v489 = vadd.f32 %v457, %v488
  %v490 = vand.u32 %v345, 4294901760
  %v491 = vsub.f32 %v345, %v490
  %v492 = vand.u32 %v491, 4294901760
  %493 = vmatmul.f32.gmra.mxu0 %v492
  %v494 = vpop.f32.mrf.mxu0
  %v495 = vadd.f32 %v462, %v494
  %496 = vdwg.mxu0
  %497 = vmatpush.msra.mxu0 0.0
  %498 = vmatpush.msra.mxu0 0.0
  %499 = vmatpush.msra.mxu0 0.0
  %500 = vmatpush.msra.mxu0 0.0
  %501 = vmatpush.msra.mxu0 0.0
  %502 = vmatpush.msra.mxu0 0.0
  %503 = vmatpush.msra.mxu0 0.0
  %504 = vmatpush.msra.mxu0 0.0
  %505 = vmatpush.msra.mxu0 0.0
  %506 = vmatpush.msra.mxu0 0.0
  %507 = vmatpush.msra.mxu0 0.0
  %508 = vmatpush.msra.mxu0 0.0
  %v509 = vand.u32 %v325, 4294901760
  %v510 = vsub.f32 %v325, %v509
  %v511 = vand.u32 %v510, 4294901760
  %512 = vmatpush.msra.mxu0 %v511
  %v513 = vand.u32 %v324, 4294901760
  %v514 = vsub.f32 %v324, %v513
  %v515 = vand.u32 %v514, 4294901760
  %516 = vmatpush.msra.mxu0 %v515
  %v517 = vand.u32 %v323, 4294901760
  %v518 = vsub.f32 %v323, %v517
  %v519 = vand.u32 %v518, 4294901760
  %520 = vmatpush.msra.mxu0 %v519
  %v521 = vand.u32 %v322, 4294901760
  %v522 = vsub.f32 %v322, %v521
  %v523 = vand.u32 %v522, 4294901760
  %524 = vmatpush.msra.mxu0 %v523
  %v525 = vand.u32 %v342, 4294901760
  %526 = vmatmul.f32.gmra.mxu0 %v525
  %v527 = vpop.f32.mrf.mxu0
  %v528 = vadd.f32 %v489, %v527
  %v529 = vand.u32 %v345, 4294901760
  %530 = vmatmul.f32.gmra.mxu0 %v529
  %v531 = vpop.f32.mrf.mxu0
  %v532 = vadd.f32 %v495, %v531
  %533 = vdwg.mxu0
  %534 = vmatpush.msra.mxu0 0.0
  %535 = vmatpush.msra.mxu0 0.0
  %536 = vmatpush.msra.mxu0 0.0
  %537 = vmatpush.msra.mxu0 0.0
  %538 = vmatpush.msra.mxu0 0.0
  %539 = vmatpush.msra.mxu0 0.0
  %540 = vmatpush.msra.mxu0 0.0
  %541 = vmatpush.msra.mxu0 0.0
  %542 = vmatpush.msra.mxu0 0.0
  %543 = vmatpush.msra.mxu0 0.0
  %544 = vmatpush.msra.mxu0 0.0
  %545 = vmatpush.msra.mxu0 0.0
  %v546 = vand.u32 %v325, 4294901760
  %547 = vmatpush.msra.mxu0 %v546
  %v548 = vand.u32 %v324, 4294901760
  %549 = vmatpush.msra.mxu0 %v548
  %v550 = vand.u32 %v323, 4294901760
  %551 = vmatpush.msra.mxu0 %v550
  %v552 = vand.u32 %v322, 4294901760
  %553 = vmatpush.msra.mxu0 %v552
  %v554 = vand.u32 %v342, 4294901760
  %555 = vmatmul.f32.gmra.mxu0 %v554
  %v556 = vpop.f32.mrf.mxu0
  %v557 = vadd.f32 %v528, %v556
  %v558 = vand.u32 %v345, 4294901760
  %559 = vmatmul.f32.gmra.mxu0 %v558
  %v560 = vpop.f32.mrf.mxu0
  %v561 = vadd.f32 %v532, %v560
  %562 = vdwg.mxu0
  %v563 = vmax.f32 %v557, 0.0
  %v564 = vmax.f32 %v561, 0.0
  %v565 = vld [vmem:[%s5] sm:$0xff]
  %v566 = vld [vmem:[%s5 + $0x8] sm:$0xff]
  %568 = vset.pattern.permute.xlu0 0
  %569 = vperm.xlu0 %568, %v565
  %v570 = vpop.permute.xlu0 %569
  %573 = vset.pattern.permute.xlu0 0
  %574 = vperm.xlu0 %573, %v566
  %v575 = vpop.permute.xlu0 %574
  %v577 = vmul.f32 %v563, %v570
  %v578 = vmul.f32 %v564, %v575
  %v579 = vadd.f32 %v577, %v578
  %v580 = vrot.slane %v579, 4
  %v581 = vadd.f32 %v579, %v580
  %v582 = vrot.slane %v581, 2
  %v583 = vadd.f32 %v581, %v582
  %v584 = vrot.slane %v583, 1
  %v585 = vadd.f32 %v583, %v584
  %s586 = sld [smem:[#allocation2]]
  %v587 = vstv %s586
  %v588 = vadd.f32 %v585, %v587
  %v589 = vxor.u32 %v588, 2147483648
  %v590 = vmul.f32 %v589, 1.442695
  %v591 = vpow.pop %v590
  %v592 = vadd.f32 %v591, 1.0
  %v593 = vrcp.pop %v592
  %v594 = vmul.f32 %v592, %v593
  %v595 = vsub.f32 1.0, %v594
  %v596 = vmul.f32 %v593, %v595
  %v597 = vadd.f32 %v593, %v596
  %vm598 = vweird.f32 %v592
  %vm599 = vweird.f32 %v593
  %vm600 = vmor %vm598, %vm599
  %v601 = vsel %vm600, %v593, %v597
  %v602 = vand.u32 2147483647, %v592
  %vm603 = vcmp.eq.f32.partialorder %v602, 8.507059e+37
  %v604 = vand.u32 %v592, 2147483648
  %v605 = vor.u32 1.1754944e-38, %v604
  %v606 = vsel %vm603, %v605, %v601
  %v607 = vmul.f32 1.0, %v606
  %608 = vst [vmem:[%s7] sm:$0x1] %v607
  // Predicated region
  $region30: #{ent_emb_forward.1} parent=0 // pred_check
    _
  $region31: #{ent_emb_forward.1} parent=0 // pred_check_branch
    %610 = sbr.rel (0) target = $region33
  $region32: #{ent_emb_forward.1} parent=0 // pred_region
    _
  $region33: #{ent_emb_forward.1} parent=0 // pred_fallthru
    _
  // Predicated region
  $region34: #{ent_emb_forward.1} parent=0 // pred_check
    _
  $region35: #{ent_emb_forward.1} parent=0 // pred_check_branch
    %612 = sbr.rel (0) target = $region37
  $region36: #{ent_emb_forward.1} parent=0 // pred_region
    _
  $region37: #{ent_emb_forward.1} parent=0 // pred_fallthru
    _

</llo_original>
